<compile_context>
chip_gen: v5e
topology: v5e:2x2
jax: 0.10.0
libtpu: 0.0.40
codegen_flags: <defaults>
</compile_context>

<pallas_src>
import jax
import jax.numpy as jnp
from jax.experimental import pallas as pl
from jax.experimental.pallas import tpu as pltpu


_LANES = 1024                 # lane-dense slab width (multiple of 128)
_ROW_TILE = 512               # rows per grid step: 512*1024*4B = 2 MiB per buffer
_VMEM_LIMIT = 40 << 20        # explicit scoped-VMEM limit (< v7x 64 MiB physical)
_PC_MAX_FOOTPRINT = 24 << 20  # per-channel 4-stream double-buffered footprint cap


def _round_up(v, m):
    return ((v + m - 1) // m) * m


def _sublane(dtype):
    """Sublane granularity for a dtype: 8 (4-byte), 16 (2-byte), 32 (1-byte)."""
    return max(8, 32 // jnp.dtype(dtype).itemsize)


def _edge_scale_core(x, s_abs, t_abs, inv_s, inv_2t):
    """Shared elementwise math in f32.  s/t operands broadcast against x.

    The torch sign(x)*expr / sign(quant)*expr chains are replaced by one shared
    (x < 0) mask + negate/select:
      * the 'reserve' branch is only selected where |x| > |t| >= 0, so x != 0 there
        and where(x<0, -mag, mag) == sign(x)*mag on every selected element;
      * quant = round(code) keeps x's sign wherever |quant| > 0.5 (code is x scaled
        by positive factors), so the same mask drives the decode branch; quant == 0
        falls through to d_sparse anyway.
    This trims the VALU op count (the binding slot on v7x); on HBM-bound v5e/v6e it
    is neutral.
    """
    ax = jnp.abs(x)
    neg = x < 0.0

    sparse = x * inv_2t
    reserve_mag = 0.5 + (ax - t_abs) * inv_s
    code = jnp.where(ax > t_abs, jnp.where(neg, -reserve_mag, reserve_mag), sparse)

    quant = jnp.round(code)                    # round-half-to-even == torch.round

    aq = jnp.abs(quant)
    d_sparse = quant * (2.0 * t_abs)
    d_reserve_mag = t_abs + (aq - 0.5) * s_abs
    dequant = jnp.where(aq > 0.5,
                        jnp.where(neg, -d_reserve_mag, d_reserve_mag),
                        d_sparse)
    return code, quant, dequant


def _scalar_kernel(s_ref, t_ref, x_ref, code_ref, quant_ref, dequant_ref):
    # s_ref / t_ref: (1,1) f32 scalars in SMEM.  Hoist |.| + reciprocals once per tile
    # so the per-element path is multiplies/selects only (no per-element divide).
    s_abs = jnp.abs(s_ref[0, 0])
    t_abs = jnp.abs(t_ref[0, 0])
    inv_s = 1.0 / s_abs
    inv_2t = 1.0 / (2.0 * t_abs)
    x = x_ref[...].astype(jnp.float32)
    code, quant, dequant = _edge_scale_core(x, s_abs, t_abs, inv_s, inv_2t)
    code_ref[...] = code.astype(code_ref.dtype)
    quant_ref[...] = quant.astype(quant_ref.dtype)
    dequant_ref[...] = dequant.astype(dequant_ref.dtype)


def _per_channel_kernel(s_ref, t_ref, x_ref, code_ref, quant_ref, dequant_ref):
    # s_ref / t_ref: (tn,1) f32 in VMEM; per-row reciprocals hoisted once per tile.
    s_abs = jnp.abs(s_ref[...])
    t_abs = jnp.abs(t_ref[...])
    inv_s = 1.0 / s_abs
    inv_2t = 1.0 / (2.0 * t_abs)
    x = x_ref[...].astype(jnp.float32)
    code, quant, dequant = _edge_scale_core(x, s_abs, t_abs, inv_s, inv_2t)
    code_ref[...] = code.astype(code_ref.dtype)
    quant_ref[...] = quant.astype(quant_ref.dtype)
    dequant_ref[...] = dequant.astype(dequant_ref.dtype)


def _edge_scale_jnp(x, s_abs, t_abs):
    """Plain-jnp path used only for the < _LANES-element ragged tail."""
    x = x.astype(jnp.float32)
    ax = jnp.abs(x)
    sgn = jnp.sign(x)
    sparse = x / (2.0 * t_abs)
    reserve = sgn * (0.5 + (ax - t_abs) / s_abs)
    code = jnp.where(ax > t_abs, reserve, sparse)
    quant = jnp.round(code)
    aq = jnp.abs(quant)
    d_sparse = quant * (2.0 * t_abs)
    d_reserve = jnp.sign(quant) * (t_abs + (aq - 0.5) * s_abs)
    dequant = jnp.where(aq > 0.5, d_reserve, d_sparse)
    return code, quant, dequant


def _forward_scalar(x, scale, threshold, orig_shape, out_dtype):
    total = int(x.size)
    flat = x.reshape(-1)
    sub = _sublane(x.dtype)

    s_smem = jnp.reshape(scale, (-1,))[0].reshape(1, 1).astype(jnp.float32)
    t_smem = jnp.reshape(threshold, (-1,))[0].reshape(1, 1).astype(jnp.float32)

    if total < _LANES:
        # Tiny tensor: one full-extent block (block dims == array dims is allowed).
        rows, width, tail = 1, total, 0
        tr = 1
        x2 = flat.reshape(1, total)
    else:
        bulk = (total // _LANES) * _LANES
        tail = total - bulk
        rows, width = bulk // _LANES, _LANES
        x2 = (flat if tail == 0 else flat[:bulk]).reshape(rows, _LANES)
        if rows >= 2 * _ROW_TILE:
            tr = _ROW_TILE                                        # 2 MiB/buffer blocks
        elif rows >= 2 * sub:
            tr = min(_ROW_TILE, _round_up(-(-rows // 2), sub))    # >= 2 steps (megacore)
        else:
            tr = _round_up(rows, sub)                             # single partial block

    grid = (pl.cdiv(rows, tr),)
    tile_spec = pl.BlockSpec((tr, width), lambda i: (i, 0))
    smem_spec = pl.BlockSpec(memory_space=pltpu.MemorySpace.SMEM)

    n_elems = rows * width
    cost = pl.CostEstimate(
        flops=20 * n_elems,
        transcendentals=0,
        bytes_accessed=n_elems * (x2.dtype.itemsize + 3 * jnp.dtype(out_dtype).itemsize),
    )

    code_b, quant_b, deq_b = pl.pallas_call(
        _scalar_kernel,
        out_shape=tuple(
            jax.ShapeDtypeStruct((rows, width), out_dtype) for _ in range(3)
        ),
        grid=grid,
        in_specs=[smem_spec, smem_spec, tile_spec],
        out_specs=[tile_spec, tile_spec, tile_spec],
        compiler_params=pltpu.CompilerParams(
            dimension_semantics=("parallel",),
            vmem_limit_bytes=_VMEM_LIMIT,
        ),
        cost_estimate=cost,
    )(s_smem, t_smem, x2)

    if tail == 0:
        return (code_b.reshape(orig_shape),
                quant_b.reshape(orig_shape),
                deq_b.reshape(orig_shape))

    # Ragged tail (< _LANES elements): negligible work, done in plain jnp and stitched
    # back.  Avoids the old pad-input / slice-each-output extra HBM passes.
    s_abs = jnp.abs(s_smem[0, 0])
    t_abs = jnp.abs(t_smem[0, 0])
    code_t, quant_t, deq_t = _edge_scale_jnp(flat[rows * width:], s_abs, t_abs)

    def stitch(bulk_out, tail_out):
        return jnp.concatenate(
            [bulk_out.reshape(-1), tail_out.astype(out_dtype)]
        ).reshape(orig_shape)

    return stitch(code_b, code_t), stitch(quant_b, quant_t), stitch(deq_b, deq_t)


def _forward_per_channel(x, scale, threshold, orig_shape, out_dtype):
    n = x.shape[0]
    x2 = x.reshape(n, -1)
    c = x2.shape[1]
    sub = _sublane(x.dtype)

    s2 = scale.reshape(n, 1).astype(jnp.float32)
    t2 = threshold.reshape(n, 1).astype(jnp.float32)

    # Lane (inner) tile: keep it a multiple of 128 so output stores stay lane-dense.
    if c % 128 == 0:
        tc = min(c, 1024)
    else:
        # TODO(synk): ragged inner width falls back to one full-width (masked-store)
        # block per row tile instead of a 128-aligned bulk + jnp tail split.
        tc = c

    # Row (channel) tile: multiple of the sublane granularity, shrunk until the
    # 4-stream double-buffered footprint stays bounded on every TPU generation.
    tn = min(256, _round_up(n, sub))
    while tn > sub and 4 * 2 * tn * tc * 4 > _PC_MAX_FOOTPRINT:
        tn //= 2
    tn = max(sub, (tn // sub) * sub)

    grid = (pl.cdiv(n, tn), pl.cdiv(c, tc))
    x_spec = pl.BlockSpec((tn, tc), lambda i, j: (i, j))
    st_spec = pl.BlockSpec((tn, 1), lambda i, j: (i, 0))

    cost = pl.CostEstimate(
        flops=20 * n * c,
        transcendentals=0,
        bytes_accessed=n * c * (x2.dtype.itemsize + 3 * jnp.dtype(out_dtype).itemsize),
    )

    code, quant, dequant = pl.pallas_call(
        _per_channel_kernel,
        out_shape=tuple(jax.ShapeDtypeStruct((n, c), out_dtype) for _ in range(3)),
        grid=grid,
        in_specs=[st_spec, st_spec, x_spec],
        out_specs=[x_spec, x_spec, x_spec],
        compiler_params=pltpu.CompilerParams(
            dimension_semantics=("parallel", "parallel"),
            vmem_limit_bytes=_VMEM_LIMIT,
        ),
        cost_estimate=cost,
    )(s2, t2, x2)

    return (code.reshape(orig_shape),
            quant.reshape(orig_shape),
            dequant.reshape(orig_shape))


def edge_scale_forward(x, scale, threshold, *, per_channel=False):
    """Pallas implementation of EdgeScale_T.forward. Returns (code, quant, dequant)."""
    orig_shape = x.shape
    out_dtype = x.dtype
    if per_channel:
        return _forward_per_channel(x, scale, threshold, orig_shape, out_dtype)
    return _forward_scalar(x, scale, threshold, orig_shape, out_dtype)


def _edge_scale_reference(x, scale, threshold, *, per_channel=False):
    """Pure-JAX reference (mirrors the torch math, including the divides)."""
    if per_channel and x.ndim > 1:
        s = scale.reshape((-1,) + (1,) * (x.ndim - 1))
        t = threshold.reshape((-1,) + (1,) * (x.ndim - 1))
    else:
        s = scale
        t = threshold
    sgn = jnp.sign(x)
    sparse = x / (2.0 * jnp.abs(t))
    reserve = sgn * (0.5 + (jnp.abs(x) - jnp.abs(t)) / jnp.abs(s))
    code = jnp.where(jnp.abs(x) > jnp.abs(t), reserve, sparse)
    quant = jnp.round(code)
    qsgn = jnp.sign(quant)
    d_sparse = quant * (2.0 * jnp.abs(t))
    d_reserve = qsgn * (jnp.abs(t) + (jnp.abs(quant) - 0.5) * jnp.abs(s))
    dequant = jnp.where(jnp.abs(quant) > 0.5, d_reserve, d_sparse)
    return code, quant, dequant


def _check(outs, refs, tag):
    for o, r, name in zip(outs, refs, ("code", "quant", "dequant")):
        assert jnp.allclose(o, r, atol=1e-5, rtol=1e-5), f"{name} mismatch ({tag})"


if __name__ == "__main__":
    key = jax.random.PRNGKey(0)
    k1, k2, k3 = jax.random.split(key, 3)

    # --- default module init: scale = thresold = [1.0], per_channel=False ---
    x = jax.random.normal(k1, (2, 4, 16, 16), dtype=jnp.float32)
    scale = jnp.array([1.0], dtype=jnp.float32)
    threshold = jnp.array([1.0], dtype=jnp.float32)

    outs = edge_scale_forward(x, scale, threshold, per_channel=False)
    jax.block_until_ready(outs)
    _check(outs, _edge_scale_reference(x, scale, threshold, per_channel=False), "scalar")

    # --- scalar path, ragged size (exercises bulk kernel + jnp tail stitch) ---
    xr = jax.random.normal(k2, (3, 5, 7, 11), dtype=jnp.float32)
    outs = edge_scale_forward(xr, scale, threshold, per_channel=False)
    jax.block_until_ready(outs)
    _check(outs, _edge_scale_reference(xr, scale, threshold, per_channel=False), "ragged")

    # --- per-channel path: one scale/threshold per dim-0 channel ---
    scale_pc = jnp.array([0.5, 2.0], dtype=jnp.float32)
    threshold_pc = jnp.array([1.0, 0.25], dtype=jnp.float32)
    outs = edge_scale_forward(x, scale_pc, threshold_pc, per_channel=True)
    jax.block_until_ready(outs)
    _check(outs, _edge_scale_reference(x, scale_pc, threshold_pc, per_channel=True),
           "per-channel")

    # --- per-channel path, ragged inner width (full-width masked-store block) ---
    xpc = jax.random.normal(k3, (4, 3, 5, 5), dtype=jnp.float32)
    scale4 = jnp.array([0.5, 2.0, 1.0, 0.25], dtype=jnp.float32)
    thresh4 = jnp.array([1.0, 0.25, 0.5, 2.0], dtype=jnp.float32)
    outs = edge_scale_forward(xpc, scale4, thresh4, per_channel=True)
    jax.block_until_ready(outs)
    _check(outs, _edge_scale_reference(xpc, scale4, thresh4, per_channel=True),
           "per-channel ragged")

    print("KERNEL_OK")
</pallas_src>

<mosaic_0001>
module attributes {stable_mosaic.version = 11 : i64} {
  func.func @_scalar_kernel(%arg0: i32, %arg1: memref<1x1xf32, #tpu.memory_space<smem>>, %arg2: memref<1x1xf32, #tpu.memory_space<smem>>, %arg3: memref<8x1024xf32, #tpu.memory_space<vmem>>, %arg4: memref<8x1024xf32, #tpu.memory_space<vmem>>, %arg5: memref<8x1024xf32, #tpu.memory_space<vmem>>, %arg6: memref<8x1024xf32, #tpu.memory_space<vmem>>) attributes {dimension_semantics = [#tpu.dimension_semantics<parallel>], iteration_bounds = array<i64: 1>, scalar_prefetch = 0 : i64, scratch_operands = 0 : i64, tpu.core_type = #tpu.core_type<tc>, window_params = [{transform_indices = @transform_0, window_bounds = array<i64: 1, 1>}, {transform_indices = @transform_1, window_bounds = array<i64: 1, 1>}, {transform_indices = @transform_2, window_bounds = array<i64: 8, 1024>}, {transform_indices = @transform_3, window_bounds = array<i64: 8, 1024>}, {transform_indices = @transform_4, window_bounds = array<i64: 8, 1024>}, {transform_indices = @transform_5, window_bounds = array<i64: 8, 1024>}]} {
    %c0 = arith.constant 0 : index
    %c0_0 = arith.constant 0 : index
    %0 = memref.load %arg1[%c0, %c0_0] : memref<1x1xf32, #tpu.memory_space<smem>>
    %1 = math.absf %0 : f32
    %c0_1 = arith.constant 0 : index
    %c0_2 = arith.constant 0 : index
    %2 = memref.load %arg2[%c0_1, %c0_2] : memref<1x1xf32, #tpu.memory_space<smem>>
    %3 = math.absf %2 : f32
    %cst = arith.constant 1.000000e+00 : f32
    %4 = arith.divf %cst, %1 : f32
    %cst_3 = arith.constant 2.000000e+00 : f32
    %5 = arith.mulf %cst_3, %3 : f32
    %cst_4 = arith.constant 1.000000e+00 : f32
    %6 = arith.divf %cst_4, %5 : f32
    %c0_5 = arith.constant 0 : index
    %c0_6 = arith.constant 0 : index
    %7 = vector.load %arg3[%c0_5, %c0_6] : memref<8x1024xf32, #tpu.memory_space<vmem>>, vector<8x1024xf32>
    %8 = math.absf %7 : vector<8x1024xf32>
    %cst_7 = arith.constant 0.000000e+00 : f32
    %9 = vector.broadcast %cst_7 : f32 to vector<8x1024xf32>
    %10 = arith.cmpf olt, %7, %9 : vector<8x1024xf32>
    %11 = vector.broadcast %6 : f32 to vector<8x1024xf32>
    %12 = arith.mulf %7, %11 : vector<8x1024xf32>
    %13 = vector.broadcast %3 : f32 to vector<8x1024xf32>
    %14 = arith.subf %8, %13 : vector<8x1024xf32>
    %15 = vector.broadcast %4 : f32 to vector<8x1024xf32>
    %16 = arith.mulf %14, %15 : vector<8x1024xf32>
    %cst_8 = arith.constant 5.000000e-01 : f32
    %17 = vector.broadcast %cst_8 : f32 to vector<8x1024xf32>
    %18 = arith.addf %17, %16 : vector<8x1024xf32>
    %19 = vector.broadcast %3 : f32 to vector<8x1024xf32>
    %20 = arith.cmpf ogt, %8, %19 : vector<8x1024xf32>
    %cst_9 = arith.constant 0.000000e+00 : f32
    %21 = vector.broadcast %cst_9 : f32 to vector<8x1024xf32>
    %22 = arith.subf %21, %18 : vector<8x1024xf32>
    %23 = arith.select %10, %22, %18 : vector<8x1024xi1>, vector<8x1024xf32>
    %24 = arith.select %20, %23, %12 : vector<8x1024xi1>, vector<8x1024xf32>
    %25 = math.roundeven %24 : vector<8x1024xf32>
    %26 = math.absf %25 : vector<8x1024xf32>
    %cst_10 = arith.constant 2.000000e+00 : f32
    %27 = arith.mulf %cst_10, %3 : f32
    %28 = vector.broadcast %27 : f32 to vector<8x1024xf32>
    %29 = arith.mulf %25, %28 : vector<8x1024xf32>
    %cst_11 = arith.constant 5.000000e-01 : f32
    %30 = vector.broadcast %cst_11 : f32 to vector<8x1024xf32>
    %31 = arith.subf %26, %30 : vector<8x1024xf32>
    %32 = vector.broadcast %1 : f32 to vector<8x1024xf32>
    %33 = arith.mulf %31, %32 : vector<8x1024xf32>
    %34 = vector.broadcast %3 : f32 to vector<8x1024xf32>
    %35 = arith.addf %34, %33 : vector<8x1024xf32>
    %cst_12 = arith.constant 5.000000e-01 : f32
    %36 = vector.broadcast %cst_12 : f32 to vector<8x1024xf32>
    %37 = arith.cmpf ogt, %26, %36 : vector<8x1024xf32>
    %cst_13 = arith.constant 0.000000e+00 : f32
    %38 = vector.broadcast %cst_13 : f32 to vector<8x1024xf32>
    %39 = arith.subf %38, %35 : vector<8x1024xf32>
    %40 = arith.select %10, %39, %35 : vector<8x1024xi1>, vector<8x1024xf32>
    %41 = arith.select %37, %40, %29 : vector<8x1024xi1>, vector<8x1024xf32>
    %c0_14 = arith.constant 0 : index
    %c0_15 = arith.constant 0 : index
    %42 = vector.load %arg4[%c0_14, %c0_15] : memref<8x1024xf32, #tpu.memory_space<vmem>>, vector<8x1024xf32>
    tpu.vector_store %arg4[%c0_14, %c0_15], %24 {strides = array<i32>} : memref<8x1024xf32, #tpu.memory_space<vmem>>, vector<8x1024xf32>,
    %c0_16 = arith.constant 0 : index
    %c0_17 = arith.constant 0 : index
    %43 = vector.load %arg5[%c0_16, %c0_17] : memref<8x1024xf32, #tpu.memory_space<vmem>>, vector<8x1024xf32>
    tpu.vector_store %arg5[%c0_16, %c0_17], %25 {strides = array<i32>} : memref<8x1024xf32, #tpu.memory_space<vmem>>, vector<8x1024xf32>,
    %c0_18 = arith.constant 0 : index
    %c0_19 = arith.constant 0 : index
    %44 = vector.load %arg6[%c0_18, %c0_19] : memref<8x1024xf32, #tpu.memory_space<vmem>>, vector<8x1024xf32>
    tpu.vector_store %arg6[%c0_18, %c0_19], %41 {strides = array<i32>} : memref<8x1024xf32, #tpu.memory_space<vmem>>, vector<8x1024xf32>,
    return
  }
  func.func @transform_0(%arg0: i32) -> (i32, i32) {
    %c0_i32 = arith.constant 0 : i32
    %c0_i32_0 = arith.constant 0 : i32
    %c0_i32_1 = arith.constant 0 : i32
    return %c0_i32, %c0_i32_0 : i32, i32
  }
  func.func @transform_1(%arg0: i32) -> (i32, i32) {
    %c0_i32 = arith.constant 0 : i32
    %c0_i32_0 = arith.constant 0 : i32
    %c0_i32_1 = arith.constant 0 : i32
    return %c0_i32, %c0_i32_0 : i32, i32
  }
  func.func @transform_2(%arg0: i32) -> (i32, i32) {
    %c0_i32 = arith.constant 0 : i32
    %c0_i32_0 = arith.constant 0 : i32
    return %arg0, %c0_i32 : i32, i32
  }
  func.func @transform_3(%arg0: i32) -> (i32, i32) {
    %c0_i32 = arith.constant 0 : i32
    %c0_i32_0 = arith.constant 0 : i32
    return %arg0, %c0_i32 : i32, i32
  }
  func.func @transform_4(%arg0: i32) -> (i32, i32) {
    %c0_i32 = arith.constant 0 : i32
    %c0_i32_0 = arith.constant 0 : i32
    return %arg0, %c0_i32 : i32, i32
  }
  func.func @transform_5(%arg0: i32) -> (i32, i32) {
    %c0_i32 = arith.constant 0 : i32
    %c0_i32_0 = arith.constant 0 : i32
    return %arg0, %c0_i32 : i32, i32
  }
}

</mosaic_0001>

<llo_original>
// kernel: tpu_custom_call.1
$region0: #{tpu_custom_call.1}
  #allocation0 [shape = 'u32[]', space=smem, size = 0x4, offset = 0x4, fixed_abs, tag = 'smem constant byte address 0x4 - core index']
  #allocation1 [shape = 'u32[72,128]{1,0:T(1,128)}', space=vmem, size = 0x9000, scoped, tag = 'internal scratch']
  #allocation2 [shape = 'f32[1,1]{1,0:T(1,128)S(6)}', space=smem, size = 0x200, scoped, tag = 'scoped memory for tpu_custom_call.1']
  #allocation3 [shape = 'f32[1,1]{1,0:T(1,128)S(6)}', space=smem, size = 0x200, scoped, tag = 'scoped memory for tpu_custom_call.1']
  %s0 = inlined_call_operand.<no memory space> [shape: f32[1,1], index: 0, kind: input, shape index: {}]
  %s1 = inlined_call_operand.<no memory space> [shape: f32[1,1], index: 1, kind: input, shape index: {}]
  %s2 = inlined_call_operand.hbm [shape: f32[2,1024], index: 2, kind: input, shape index: {}]
  %s3 = inlined_call_operand.hbm [shape: f32[2,1024], index: 3, kind: output, shape index: {0}]
  %s4 = inlined_call_operand.hbm [shape: f32[2,1024], index: 4, kind: output, shape index: {1}]
  %s5 = inlined_call_operand.hbm [shape: f32[2,1024], index: 5, kind: output, shape index: {2}]
  %6 = xla_tuple %s3, %s4, %s5
  %s7 = sld [smem:[#allocation0]]
  $region42: #{tpu_custom_call.1} parent=0
    _
  %s9 = ssub.s32 1, %s7
  %s10 = scalar_select 0, %s9, %s7
  %11 = sst [smem:[#allocation2]] %s0
  %12 = sst [smem:[#allocation3]] %s1
  $region1: #{tpu_custom_call.1} parent=0
    #allocation4 [shape = 'u8[32768]{0}', space=vmem, size = 0x8000, scoped, tag = 'input window, operand 2, single buffered']
    #allocation5 [shape = 's32[1]{0}', space=sflag, size = 0x4, scoped, tag = 'scoped memory for tpu_custom_call.1']
    #allocation6 [shape = 's32[1]{0}', space=sflag, size = 0x4, scoped, tag = 'scoped memory for tpu_custom_call.1']
    #allocation7 [shape = 'u8[32768]{0}', space=vmem, size = 0x8000, scoped, tag = 'output window, operand 0, single buffered']
    #allocation8 [shape = 'u8[32768]{0}', space=vmem, size = 0x8000, scoped, tag = 'output window, operand 1, single buffered']
    #allocation9 [shape = 's32[1]{0}', space=sflag, size = 0x4, scoped, tag = 'scoped memory for tpu_custom_call.1']
    #allocation10 [shape = 'u8[32768]{0}', space=vmem, size = 0x8000, scoped, tag = 'output window, operand 2, single buffered']
    %13 = vsyncpa [#allocation5], 0
    %14 = vsyncpa [#allocation6], 0
    %15 = vsyncpa [#allocation9], 0
    // Predicated region
    $region2: #{tpu_custom_call.1} parent=1 // pred_check
      _
    $region3: #{tpu_custom_call.1} parent=1 // pred_check_branch
      %17 = sbr.rel (0) target = $region5
    $region4: #{tpu_custom_call.1} parent=1 // pred_region
      _
    $region5: #{tpu_custom_call.1} parent=1 // pred_fallthru
      _
    // Predicated region
    $region6: #{tpu_custom_call.1} parent=1 // pred_check
      _
    $region7: #{tpu_custom_call.1} parent=1 // pred_check_branch
      %19 = sbr.rel (0) target = $region9
    $region8: #{tpu_custom_call.1} parent=1 // pred_region
      _
    $region9: #{tpu_custom_call.1} parent=1 // pred_fallthru
      _
    // Predicated region
    $region10: #{tpu_custom_call.1} parent=1 // pred_check
      _
    $region11: #{tpu_custom_call.1} parent=1 // pred_check_branch
      %21 = sbr.rel (0) target = $region13
    $region12: #{tpu_custom_call.1} parent=1 // pred_region
      %23 = vsyncadd [#allocation5], 768
      %s24 = sshll.u32 %s2, 4
      %s25 = int_to_ptr.hbm [resolvable:$true] %s24
      %s26 = sshll.u32 [#allocation4], 4
      %s27 = int_to_ptr.vmem [resolvable:$true] %s26
      %32 = dma.hbm_to_vmem [thread:$0]  %s25, 256, %s27, [#allocation5], 256, 256, 16
    $region13: #{tpu_custom_call.1} parent=1 // pred_fallthru
      _
    // Predicated region
    $region14: #{tpu_custom_call.1} parent=1 // pred_check
      _
    $region15: #{tpu_custom_call.1} parent=1 // pred_check_branch
      %34 = sbr.rel (0) target = $region17
    $region16: #{tpu_custom_call.1} parent=1 // pred_region
      %36 = dma.done [#allocation5], 1024
    $region17: #{tpu_custom_call.1} parent=1 // pred_fallthru
      _
    %s37 = sld [smem:[#allocation2]]
    %s38 = sand.u32 2147483647, %s37
    %s39 = sld [smem:[#allocation3]]
    %s40 = sand.u32 2147483647, %s39
    %v41 = vstv %s38
    %v42 = vrcp.pop %v41
    %v43 = vmul.f32 %v41, %v42
    %v44 = vsub.f32 1.0, %v43
    %v45 = vmul.f32 %v42, %v44
    %v46 = vadd.f32 %v42, %v45
    %vm47 = vweird.f32 %v41
    %vm48 = vweird.f32 %v42
    %vm49 = vmor %vm47, %vm48
    %v50 = vsel %vm49, %v42, %v46
    %v51 = vand.u32 2147483647, %v41
    %vm52 = vcmp.eq.f32.partialorder %v51, 8.507059e+37
    %v53 = vand.u32 %v41, 2147483648
    %v54 = vor.u32 1.1754944e-38, %v53
    %v55 = vsel %vm52, %v54, %v50
    %s56 = vtos %v55
    %s57 = smul.f32 %s40, 2.0
    %v58 = vstv %s57
    %v59 = vrcp.pop %v58
    %v60 = vmul.f32 %v58, %v59
    %v61 = vsub.f32 1.0, %v60
    %v62 = vmul.f32 %v59, %v61
    %v63 = vadd.f32 %v59, %v62
    %vm64 = vweird.f32 %v58
    %vm65 = vweird.f32 %v59
    %vm66 = vmor %vm64, %vm65
    %v67 = vsel %vm66, %v59, %v63
    %v68 = vand.u32 2147483647, %v58
    %vm69 = vcmp.eq.f32.partialorder %v68, 8.507059e+37
    %v70 = vand.u32 %v58, 2147483648
    %v71 = vor.u32 1.1754944e-38, %v70
    %v72 = vsel %vm69, %v71, %v67
    %s73 = vtos %v72
    %v74 = vld [vmem:[#allocation4] sm:$0xff]
    %v75 = vld [vmem:[#allocation4 + $0x8] sm:$0xff]
    %v76 = vld [vmem:[#allocation4 + $0x10] sm:$0xff]
    %v77 = vld [vmem:[#allocation4 + $0x18] sm:$0xff]
    %v78 = vld [vmem:[#allocation4 + $0x20] sm:$0xff]
    %v79 = vld [vmem:[#allocation4 + $0x28] sm:$0xff]
    %v80 = vld [vmem:[#allocation4 + $0x30] sm:$0xff]
    %v81 = vld [vmem:[#allocation4 + $0x38] sm:$0xff]
    %v82 = vand.u32 2147483647, %v74
    %v83 = vand.u32 2147483647, %v75
    %v84 = vand.u32 2147483647, %v76
    %v85 = vand.u32 2147483647, %v77
    %v86 = vand.u32 2147483647, %v78
    %v87 = vand.u32 2147483647, %v79
    %v88 = vand.u32 2147483647, %v80
    %v89 = vand.u32 2147483647, %v81
    %vm90 = vcmp.lt.f32.partialorder %v74, 0.0
    %vm91 = vcmp.lt.f32.partialorder %v75, 0.0
    %vm92 = vcmp.lt.f32.partialorder %v76, 0.0
    %vm93 = vcmp.lt.f32.partialorder %v77, 0.0
    %vm94 = vcmp.lt.f32.partialorder %v78, 0.0
    %vm95 = vcmp.lt.f32.partialorder %v79, 0.0
    %vm96 = vcmp.lt.f32.partialorder %v80, 0.0
    %vm97 = vcmp.lt.f32.partialorder %v81, 0.0
    %v98 = vstv %s73
    %v99 = vmul.f32 %v74, %v98
    %v100 = vmul.f32 %v75, %v98
    %v101 = vmul.f32 %v76, %v98
    %v102 = vmul.f32 %v77, %v98
    %v103 = vmul.f32 %v78, %v98
    %v104 = vmul.f32 %v79, %v98
    %v105 = vmul.f32 %v80, %v98
    %v106 = vmul.f32 %v81, %v98
    %v107 = vstv %s40
    %v108 = vsub.f32 %v82, %v107
    %v109 = vsub.f32 %v83, %v107
    %v110 = vsub.f32 %v84, %v107
    %v111 = vsub.f32 %v85, %v107
    %v112 = vsub.f32 %v86, %v107
    %v113 = vsub.f32 %v87, %v107
    %v114 = vsub.f32 %v88, %v107
    %v115 = vsub.f32 %v89, %v107
    %v116 = vstv %s56
    %v117 = vmul.f32 %v108, %v116
    %v118 = vmul.f32 %v109, %v116
    %v119 = vmul.f32 %v110, %v116
    %v120 = vmul.f32 %v111, %v116
    %v121 = vmul.f32 %v112, %v116
    %v122 = vmul.f32 %v113, %v116
    %v123 = vmul.f32 %v114, %v116
    %v124 = vmul.f32 %v115, %v116
    %v125 = vadd.f32 %v117, 0.5
    %v126 = vadd.f32 %v118, 0.5
    %v127 = vadd.f32 %v119, 0.5
    %v128 = vadd.f32 %v120, 0.5
    %v129 = vadd.f32 %v121, 0.5
    %v130 = vadd.f32 %v122, 0.5
    %v131 = vadd.f32 %v123, 0.5
    %v132 = vadd.f32 %v124, 0.5
    %vm133 = vcmp.gt.f32.partialorder %v82, %v107
    %vm134 = vcmp.gt.f32.partialorder %v83, %v107
    %vm135 = vcmp.gt.f32.partialorder %v84, %v107
    %vm136 = vcmp.gt.f32.partialorder %v85, %v107
    %vm137 = vcmp.gt.f32.partialorder %v86, %v107
    %vm138 = vcmp.gt.f32.partialorder %v87, %v107
    %vm139 = vcmp.gt.f32.partialorder %v88, %v107
    %vm140 = vcmp.gt.f32.partialorder %v89, %v107
    %v141 = vsub.f32 0.0, %v125
    %v142 = vsub.f32 0.0, %v126
    %v143 = vsub.f32 0.0, %v127
    %v144 = vsub.f32 0.0, %v128
    %v145 = vsub.f32 0.0, %v129
    %v146 = vsub.f32 0.0, %v130
    %v147 = vsub.f32 0.0, %v131
    %v148 = vsub.f32 0.0, %v132
    %v149 = vsel %vm90, %v141, %v125
    %v150 = vsel %vm91, %v142, %v126
    %v151 = vsel %vm92, %v143, %v127
    %v152 = vsel %vm93, %v144, %v128
    %v153 = vsel %vm94, %v145, %v129
    %v154 = vsel %vm95, %v146, %v130
    %v155 = vsel %vm96, %v147, %v131
    %v156 = vsel %vm97, %v148, %v132
    %v157 = vsel %vm133, %v149, %v99
    %v158 = vsel %vm134, %v150, %v100
    %v159 = vsel %vm135, %v151, %v101
    %v160 = vsel %vm136, %v152, %v102
    %v161 = vsel %vm137, %v153, %v103
    %v162 = vsel %vm138, %v154, %v104
    %v163 = vsel %vm139, %v155, %v105
    %v164 = vsel %vm140, %v156, %v106
    %v165 = vround.ne.pseudo %v157
    %v166 = vround.ne.pseudo %v158
    %v167 = vround.ne.pseudo %v159
    %v168 = vround.ne.pseudo %v160
    %v169 = vround.ne.pseudo %v161
    %v170 = vround.ne.pseudo %v162
    %v171 = vround.ne.pseudo %v163
    %v172 = vround.ne.pseudo %v164
    %v173 = vand.u32 2147483647, %v165
    %v174 = vand.u32 2147483647, %v166
    %v175 = vand.u32 2147483647, %v167
    %v176 = vand.u32 2147483647, %v168
    %v177 = vand.u32 2147483647, %v169
    %v178 = vand.u32 2147483647, %v170
    %v179 = vand.u32 2147483647, %v171
    %v180 = vand.u32 2147483647, %v172
    %v181 = vstv %s57
    %v182 = vmul.f32 %v165, %v181
    %v183 = vmul.f32 %v166, %v181
    %v184 = vmul.f32 %v167, %v181
    %v185 = vmul.f32 %v168, %v181
    %v186 = vmul.f32 %v169, %v181
    %v187 = vmul.f32 %v170, %v181
    %v188 = vmul.f32 %v171, %v181
    %v189 = vmul.f32 %v172, %v181
    %v190 = vsub.f32 %v173, 0.5
    %v191 = vsub.f32 %v174, 0.5
    %v192 = vsub.f32 %v175, 0.5
    %v193 = vsub.f32 %v176, 0.5
    %v194 = vsub.f32 %v177, 0.5
    %v195 = vsub.f32 %v178, 0.5
    %v196 = vsub.f32 %v179, 0.5
    %v197 = vsub.f32 %v180, 0.5
    %v198 = vstv %s38
    %v199 = vmul.f32 %v190, %v198
    %v200 = vmul.f32 %v191, %v198
    %v201 = vmul.f32 %v192, %v198
    %v202 = vmul.f32 %v193, %v198
    %v203 = vmul.f32 %v194, %v198
    %v204 = vmul.f32 %v195, %v198
    %v205 = vmul.f32 %v196, %v198
    %v206 = vmul.f32 %v197, %v198
    %v207 = vadd.f32 %v107, %v199
    %v208 = vadd.f32 %v107, %v200
    %v209 = vadd.f32 %v107, %v201
    %v210 = vadd.f32 %v107, %v202
    %v211 = vadd.f32 %v107, %v203
    %v212 = vadd.f32 %v107, %v204
    %v213 = vadd.f32 %v107, %v205
    %v214 = vadd.f32 %v107, %v206
    %vm215 = vcmp.gt.f32.partialorder %v173, 0.5
    %vm216 = vcmp.gt.f32.partialorder %v174, 0.5
    %vm217 = vcmp.gt.f32.partialorder %v175, 0.5
    %vm218 = vcmp.gt.f32.partialorder %v176, 0.5
    %vm219 = vcmp.gt.f32.partialorder %v177, 0.5
    %vm220 = vcmp.gt.f32.partialorder %v178, 0.5
    %vm221 = vcmp.gt.f32.partialorder %v179, 0.5
    %vm222 = vcmp.gt.f32.partialorder %v180, 0.5
    %v223 = vsub.f32 0.0, %v207
    %v224 = vsub.f32 0.0, %v208
    %v225 = vsub.f32 0.0, %v209
    %v226 = vsub.f32 0.0, %v210
    %v227 = vsub.f32 0.0, %v211
    %v228 = vsub.f32 0.0, %v212
    %v229 = vsub.f32 0.0, %v213
    %v230 = vsub.f32 0.0, %v214
    %v231 = vsel %vm90, %v223, %v207
    %v232 = vsel %vm91, %v224, %v208
    %v233 = vsel %vm92, %v225, %v209
    %v234 = vsel %vm93, %v226, %v210
    %v235 = vsel %vm94, %v227, %v211
    %v236 = vsel %vm95, %v228, %v212
    %v237 = vsel %vm96, %v229, %v213
    %v238 = vsel %vm97, %v230, %v214
    %v239 = vsel %vm215, %v231, %v182
    %v240 = vsel %vm216, %v232, %v183
    %v241 = vsel %vm217, %v233, %v184
    %v242 = vsel %vm218, %v234, %v185
    %v243 = vsel %vm219, %v235, %v186
    %v244 = vsel %vm220, %v236, %v187
    %v245 = vsel %vm221, %v237, %v188
    %v246 = vsel %vm222, %v238, %v189
    %247 = vst [vmem:[#allocation7] sm:$0xff] %v157
    %248 = vst [vmem:[#allocation7 + $0x8] sm:$0xff] %v158
    %249 = vst [vmem:[#allocation7 + $0x10] sm:$0xff] %v159
    %250 = vst [vmem:[#allocation7 + $0x18] sm:$0xff] %v160
    %251 = vst [vmem:[#allocation7 + $0x20] sm:$0xff] %v161
    %252 = vst [vmem:[#allocation7 + $0x28] sm:$0xff] %v162
    %253 = vst [vmem:[#allocation7 + $0x30] sm:$0xff] %v163
    %254 = vst [vmem:[#allocation7 + $0x38] sm:$0xff] %v164
    %255 = vst [vmem:[#allocation8] sm:$0xff] %v165
    %256 = vst [vmem:[#allocation8 + $0x8] sm:$0xff] %v166
    %257 = vst [vmem:[#allocation8 + $0x10] sm:$0xff] %v167
    %258 = vst [vmem:[#allocation8 + $0x18] sm:$0xff] %v168
    %259 = vst [vmem:[#allocation8 + $0x20] sm:$0xff] %v169
    %260 = vst [vmem:[#allocation8 + $0x28] sm:$0xff] %v170
    %261 = vst [vmem:[#allocation8 + $0x30] sm:$0xff] %v171
    %262 = vst [vmem:[#allocation8 + $0x38] sm:$0xff] %v172
    %263 = vst [vmem:[#allocation10] sm:$0xff] %v239
    %264 = vst [vmem:[#allocation10 + $0x8] sm:$0xff] %v240
    %265 = vst [vmem:[#allocation10 + $0x10] sm:$0xff] %v241
    %266 = vst [vmem:[#allocation10 + $0x18] sm:$0xff] %v242
    %267 = vst [vmem:[#allocation10 + $0x20] sm:$0xff] %v243
    %268 = vst [vmem:[#allocation10 + $0x28] sm:$0xff] %v244
    %269 = vst [vmem:[#allocation10 + $0x30] sm:$0xff] %v245
    %270 = vst [vmem:[#allocation10 + $0x38] sm:$0xff] %v246
    // Predicated region
    $region18: #{tpu_custom_call.1} parent=1 // pred_check
      _
    $region19: #{tpu_custom_call.1} parent=1 // pred_check_branch
      %272 = sbr.rel (0) target = $region21
    $region20: #{tpu_custom_call.1} parent=1 // pred_region
      %274 = vsyncadd [#allocation6], 768
      %s275 = sshll.u32 [#allocation7], 4
      %s276 = int_to_ptr.vmem [resolvable:$true] %s275
      %s277 = sshll.u32 %s3, 4
      %s278 = int_to_ptr.hbm [resolvable:$true] %s277
      %283 = dma.vmem_to_hbm [thread:$0]  %s276, 256, %s278, [#allocation6], 256, 256, 16
    $region21: #{tpu_custom_call.1} parent=1 // pred_fallthru
      _
    // Predicated region
    $region22: #{tpu_custom_call.1} parent=1 // pred_check
      _
    $region23: #{tpu_custom_call.1} parent=1 // pred_check_branch
      %285 = sbr.rel (0) target = $region25
    $region24: #{tpu_custom_call.1} parent=1 // pred_region
      %287 = vsyncadd [#allocation9], 768
      %s288 = sshll.u32 [#allocation8], 4
      %s289 = int_to_ptr.vmem [resolvable:$true] %s288
      %s290 = sshll.u32 %s4, 4
      %s291 = int_to_ptr.hbm [resolvable:$true] %s290
      %296 = dma.vmem_to_hbm [thread:$0]  %s289, 256, %s291, [#allocation9], 256, 256, 16
    $region25: #{tpu_custom_call.1} parent=1 // pred_fallthru
      _
    // Predicated region
    $region26: #{tpu_custom_call.1} parent=1 // pred_check
      _
    $region27: #{tpu_custom_call.1} parent=1 // pred_check_branch
      %298 = sbr.rel (0) target = $region29
    $region28: #{tpu_custom_call.1} parent=1 // pred_region
      %300 = vsyncadd [#allocation9], 768
      %s301 = sshll.u32 [#allocation10], 4
      %s302 = int_to_ptr.vmem [resolvable:$true] %s301
      %s303 = sshll.u32 %s5, 4
      %s304 = int_to_ptr.hbm [resolvable:$true] %s303
      %309 = dma.vmem_to_hbm [thread:$0]  %s302, 256, %s304, [#allocation9], 256, 256, 16
    $region29: #{tpu_custom_call.1} parent=1 // pred_fallthru
      _
    // Predicated region
    $region30: #{tpu_custom_call.1} parent=1 // pred_check
      _
    $region31: #{tpu_custom_call.1} parent=1 // pred_check_branch
      %311 = sbr.rel (0) target = $region33
    $region32: #{tpu_custom_call.1} parent=1 // pred_region
      %313 = dma.done [#allocation6], 1024
    $region33: #{tpu_custom_call.1} parent=1 // pred_fallthru
      _
    // Predicated region
    $region34: #{tpu_custom_call.1} parent=1 // pred_check
      _
    $region35: #{tpu_custom_call.1} parent=1 // pred_check_branch
      %315 = sbr.rel (0) target = $region37
    $region36: #{tpu_custom_call.1} parent=1 // pred_region
      %317 = dma.done [#allocation9], 1024
    $region37: #{tpu_custom_call.1} parent=1 // pred_fallthru
      _
    // Predicated region
    $region38: #{tpu_custom_call.1} parent=1 // pred_check
      _
    $region39: #{tpu_custom_call.1} parent=1 // pred_check_branch
      %319 = sbr.rel (0) target = $region41
    $region40: #{tpu_custom_call.1} parent=1 // pred_region
      %321 = dma.done [#allocation9], 1024
    $region41: #{tpu_custom_call.1} parent=1 // pred_fallthru
      _
    %322 = vsyncpa [#allocation5], 1
    %323 = vsyncpa [#allocation6], 1
    %324 = vsyncpa [#allocation9], 1

</llo_original>
